<compile_context>
chip_gen: v7x
topology: tpu7x:2x2x1
jax: 0.10.0
libtpu: 0.0.40
codegen_flags: <defaults>
</compile_context>

<pallas_src>
import functools

import jax
import jax.numpy as jnp
from jax.experimental import pallas as pl
from jax.experimental.pallas import tpu as pltpu

LANE = 128
CONV_STRIDE = 2


def _round_up(x, m):
    return ((x + m - 1) // m) * m


# ----------------------------------------------------------------------------
# Tiled matmul + bias (+ optional ReLU) kernel
# ----------------------------------------------------------------------------
def _matmul_kernel(x_ref, w_ref, b_ref, o_ref, acc_ref, *, relu):
    @pl.when(pl.program_id(2) == 0)
    def _init():
        acc_ref[...] = jnp.zeros_like(acc_ref)

    acc_ref[...] += jnp.dot(x_ref[...], w_ref[...],
                            preferred_element_type=jnp.float32)

    @pl.when(pl.program_id(2) == pl.num_programs(2) - 1)
    def _epilogue():
        r = acc_ref[...] + b_ref[...].astype(jnp.float32)
        if relu:
            r = jnp.maximum(r, 0.0)
        o_ref[...] = r.astype(o_ref.dtype)


def _pick_tile(dim, pref, align):
    return pref if dim >= pref else _round_up(dim, align)


def matmul_bias(x, w, b, *, relu=False, out_dtype=jnp.float32):
    """x: (M, K), w: (K, N), b: (1, N) -> (M, N) via a tiled, pipelined MXU matmul."""
    M, K = x.shape
    K2, N = w.shape
    assert K == K2 and b.shape == (1, N)

    tm = _pick_tile(M, 256, 8)
    tn = _pick_tile(N, 256, LANE)
    tk = _pick_tile(K, 512, LANE)
    Mp, Np, Kp = _round_up(M, tm), _round_up(N, tn), _round_up(K, tk)

    xd = x if (Mp, Kp) == (M, K) else jnp.pad(x, ((0, Mp - M), (0, Kp - K)))
    wd = w if (Kp, Np) == (K, N) else jnp.pad(w, ((0, Kp - K), (0, Np - N)))
    bd = b if Np == N else jnp.pad(b, ((0, 0), (0, Np - N)))

    bytes_accessed = (xd.size * xd.dtype.itemsize + wd.size * wd.dtype.itemsize
                      + bd.size * bd.dtype.itemsize
                      + Mp * Np * jnp.dtype(out_dtype).itemsize)

    out = pl.pallas_call(
        functools.partial(_matmul_kernel, relu=relu),
        out_shape=jax.ShapeDtypeStruct((Mp, Np), out_dtype),
        grid_spec=pltpu.PrefetchScalarGridSpec(
            num_scalar_prefetch=0,
            grid=(Mp // tm, Np // tn, Kp // tk),
            in_specs=[
                pl.BlockSpec((tm, tk), lambda i, j, k: (i, k)),
                pl.BlockSpec((tk, tn), lambda i, j, k: (k, j)),
                pl.BlockSpec((1, tn), lambda i, j, k: (0, j)),
            ],
            out_specs=pl.BlockSpec((tm, tn), lambda i, j, k: (i, j)),
            scratch_shapes=[pltpu.VMEM((tm, tn), jnp.float32)],
        ),
        compiler_params=pltpu.CompilerParams(
            dimension_semantics=("parallel", "parallel", "arbitrary")),
        cost_estimate=pl.CostEstimate(
            flops=2 * Mp * Np * Kp, transcendentals=0,
            bytes_accessed=int(bytes_accessed)),
    )(xd, wd, bd)
    return out[:M, :N]


# ----------------------------------------------------------------------------
# Fused Conv1d(stride=2, pad=K//2) + bias + ReLU kernel (no HBM im2col)
# ----------------------------------------------------------------------------
def _conv_kernel(x_ref, w_ref, b_ref, o_ref, *, kernel_size, cin_pad):
    """One batch element.

    x_ref: (Lh, 2*cin_pad)  (even|odd)-packed padded rows
    w_ref: (K, cin_pad, cout_pad);  b_ref: (1, cout_pad);  o_ref: (L_out, cout_pad)
    """
    l_out, cout = o_ref.shape
    acc = jnp.zeros((l_out, cout), jnp.float32)
    for k in range(kernel_size):          # static unroll over the K taps
        half = k % 2                      # even taps in [:, :cin], odd in [:, cin:]
        off = k // 2                      # row offset inside the packed view
        xk = x_ref[off:off + l_out, half * cin_pad:(half + 1) * cin_pad]
        acc = acc + jnp.dot(xk, w_ref[k], preferred_element_type=jnp.float32)
    acc = acc + b_ref[...].astype(jnp.float32)
    o_ref[...] = jnp.maximum(acc, 0.0).astype(o_ref.dtype)


def conv_layer(x, w, b, *, kernel_size):
    """x: (B, L, Cin_pad), w: (K, Cin_pad, Cout_pad), b: (1, Cout_pad)
    -> (B, L_out, Cout_pad)."""
    B, L, cin = x.shape
    K = kernel_size
    pad = K // 2
    cout = w.shape[-1]
    l_out = (L + 2 * pad - K) // CONV_STRIDE + 1

    # (even|odd) packing: packed row j holds padded rows 2j (first cin lanes) and
    # 2j+1 (last cin lanes).  Output t, tap k reads packed row t + k//2, half k%2,
    # so every in-kernel slice is contiguous and HBM traffic stays 1x (not K-fold).
    lh = (K - 1) // 2 + l_out
    right = 2 * lh - L - pad
    assert right >= 0
    xp = jnp.pad(x, ((0, 0), (pad, right), (0, 0)))
    xr = xp.reshape(B, lh, 2 * cin)

    bytes_accessed = (xr.size * xr.dtype.itemsize + w.size * w.dtype.itemsize
                      + b.size * b.dtype.itemsize
                      + B * l_out * cout * x.dtype.itemsize)

    return pl.pallas_call(
        functools.partial(_conv_kernel, kernel_size=K, cin_pad=cin),
        out_shape=jax.ShapeDtypeStruct((B, l_out, cout), x.dtype),
        grid=(B,),
        in_specs=[
            pl.BlockSpec((None, lh, 2 * cin), lambda bb: (bb, 0, 0)),
            pl.BlockSpec((K, cin, cout), lambda bb: (0, 0, 0)),   # weights resident
            pl.BlockSpec((1, cout), lambda bb: (0, 0)),           # bias resident
        ],
        out_specs=pl.BlockSpec((None, l_out, cout), lambda bb: (bb, 0, 0)),
        compiler_params=pltpu.CompilerParams(dimension_semantics=("parallel",)),
        cost_estimate=pl.CostEstimate(
            flops=2 * B * l_out * K * cin * cout, transcendentals=0,
            bytes_accessed=int(bytes_accessed)),
    )(xr, w, b)


def conv_out_len(L, K):
    return (L + 2 * (K // 2) - K) // CONV_STRIDE + 1


# ----------------------------------------------------------------------------
# Canonical (unpadded) parameters, mirroring the PyTorch module
# ----------------------------------------------------------------------------
def make_conv_params(key, in_dim, num_layers, kernel_size, num_channels, out_dim,
                     scale=0.05):
    """ConvBlock.make_conv_blocks channel plan: in -> C -> ... -> C -> out."""
    dims = [in_dim] + [num_channels] * (num_layers - 1) + [out_dim]
    params = []
    for li in range(num_layers):
        key, kw, kb = jax.random.split(key, 3)
        w = scale * jax.random.normal(kw, (kernel_size, dims[li], dims[li + 1]),
                                      jnp.float32)
        b = scale * jax.random.normal(kb, (dims[li + 1],), jnp.float32)
        params.append((w, b))
    return params, key


def init_acostic_set(key, *, input_dim, num_layers, kernel_size, num_channels,
                     cnet_out_dim, output_dim, acostic_frame_width, use_power=True):
    params = {"use_power": use_power, "kernel_size": kernel_size,
              "output_dim": output_dim, "input_dim": input_dim}
    params["acostic"], key = make_conv_params(
        key, input_dim, num_layers, kernel_size, num_channels, cnet_out_dim)
    power_out = cnet_out_dim // 4
    if use_power:
        power_channels = num_channels // 4
        params["power"], key = make_conv_params(
            key, 1, num_layers, kernel_size, power_channels, power_out)

    out_seq = acostic_frame_width                   # get_output_seq equivalent
    for _ in range(num_layers):
        out_seq = conv_out_len(out_seq, kernel_size)
    params["output_seq"] = out_seq

    dense_input = cnet_out_dim + power_out if use_power else cnet_out_dim
    params["dense_input"] = dense_input
    params["cnet_out_dim"] = cnet_out_dim
    params["power_out"] = power_out if use_power else 0

    key, k1, k2, k3, k4 = jax.random.split(key, 5)
    params["d1_w"] = 0.05 * jax.random.normal(
        k1, (dense_input * out_seq, dense_input), jnp.float32)
    params["d1_b"] = 0.05 * jax.random.normal(k2, (dense_input,), jnp.float32)
    params["d2_w"] = 0.05 * jax.random.normal(k3, (dense_input, output_dim),
                                              jnp.float32)
    params["d2_b"] = 0.05 * jax.random.normal(k4, (output_dim,), jnp.float32)
    return params


# ----------------------------------------------------------------------------
# Lane-padded, branch-fused operands built from the canonical params
# ----------------------------------------------------------------------------
def prepare_padded_params(canon, *, use_bf16=True):
    """Pad every channel dim to a multiple of 128 and fuse the acoustic/power
    branches into block-diagonal conv weights.  Padded rows/cols and biases are
    zero, so the forward pass is numerically equivalent to the unpadded model."""
    cdt = jnp.bfloat16 if use_bf16 else jnp.float32
    use_power = canon["use_power"]
    K = canon["kernel_size"]
    a_layers = canon["acostic"]
    p_layers = canon["power"] if use_power else None
    num_layers = len(a_layers)

    conv = []
    cin0_a_pad = cin0_p_pad = 0
    ca_last = ca_last_p = cp_last = cp_last_p = 0
    for li in range(num_layers):
        wa, ba = a_layers[li]
        ca_in, ca_out = wa.shape[1], wa.shape[2]
        ca_in_p, ca_out_p = _round_up(ca_in, LANE), _round_up(ca_out, LANE)
        if use_power:
            wp, bp = p_layers[li]
            cp_in, cp_out = wp.shape[1], wp.shape[2]
            cp_in_p, cp_out_p = _round_up(cp_in, LANE), _round_up(cp_out, LANE)
        else:
            cp_in = cp_out = cp_in_p = cp_out_p = 0
        cin_c, cout_c = ca_in_p + cp_in_p, ca_out_p + cp_out_p

        w_c = jnp.zeros((K, cin_c, cout_c), jnp.float32)
        w_c = w_c.at[:, :ca_in, :ca_out].set(wa)
        b_c = jnp.zeros((1, cout_c), jnp.float32)
        b_c = b_c.at[0, :ca_out].set(ba)
        if use_power:
            w_c = w_c.at[:, ca_in_p:ca_in_p + cp_in,
                         ca_out_p:ca_out_p + cp_out].set(wp)
            b_c = b_c.at[0, ca_out_p:ca_out_p + cp_out].set(bp)
        conv.append((w_c.astype(cdt), b_c))

        if li == 0:
            cin0_a_pad, cin0_p_pad = ca_in_p, cp_in_p
        if li == num_layers - 1:
            ca_last, ca_last_p = ca_out, ca_out_p
            cp_last, cp_last_p = cp_out, cp_out_p

    out_seq = canon["output_seq"]
    c_total_p = ca_last_p + cp_last_p
    di = canon["dense_input"]
    n1_p = _round_up(di, LANE)

    # d1 rows follow the kernel's (seq-major, padded-channel-minor) flatten order,
    # matching torch's cat(x.transpose, p.transpose).view(B, -1) ordering.
    d1w = canon["d1_w"]
    d1w_p = jnp.zeros((out_seq * c_total_p, n1_p), jnp.float32)
    for t in range(out_seq):
        d1w_p = d1w_p.at[t * c_total_p:t * c_total_p + ca_last, :di].set(
            d1w[t * di:t * di + ca_last, :])
        if use_power:
            d1w_p = d1w_p.at[
                t * c_total_p + ca_last_p:t * c_total_p + ca_last_p + cp_last,
                :di].set(d1w[t * di + ca_last:(t + 1) * di, :])
    d1b_p = jnp.zeros((1, n1_p), jnp.float32).at[0, :di].set(canon["d1_b"])

    n2 = canon["output_dim"]
    n2_p = _round_up(n2, LANE)
    d2w_p = jnp.zeros((n1_p, n2_p), jnp.float32).at[:di, :n2].set(canon["d2_w"])
    d2b_p = jnp.zeros((1, n2_p), jnp.float32).at[0, :n2].set(canon["d2_b"])

    return {
        "cdt": cdt, "use_power": use_power, "kernel_size": K,
        "cin0_a_pad": cin0_a_pad, "cin0_p_pad": cin0_p_pad,
        "conv": conv,
        "d1_w": d1w_p.astype(cdt), "d1_b": d1b_p,
        "d2_w": d2w_p.astype(cdt), "d2_b": d2b_p,
        "output_dim": n2,
    }


# ----------------------------------------------------------------------------
# Forward pass
# ----------------------------------------------------------------------------
def acostic_set_forward(pp, fbank, log_power=None):
    """fbank: (B, seq, input_dim), log_power: (B, seq) -> (B, output_dim) f32."""
    B, L, in_dim = fbank.shape
    cdt = pp["cdt"]
    x = jnp.pad(fbank, ((0, 0), (0, 0), (0, pp["cin0_a_pad"] - in_dim))).astype(cdt)
    if pp["use_power"]:
        p = jnp.pad(log_power[:, :, None],
                    ((0, 0), (0, 0), (0, pp["cin0_p_pad"] - 1))).astype(cdt)
        x = jnp.concatenate([x, p], axis=-1)   # fused [acoustic | power] channels

    for w, b in pp["conv"]:
        x = conv_layer(x, w, b, kernel_size=pp["kernel_size"])

    Bx, S, C = x.shape
    flat = x.reshape(Bx, S * C)   # seq-major, channel-minor == torch's .view order
    h = matmul_bias(flat, pp["d1_w"], pp["d1_b"], relu=False)
    y = matmul_bias(h.astype(cdt), pp["d2_w"], pp["d2_b"], relu=False)
    return y[:, :pp["output_dim"]]


# ----------------------------------------------------------------------------
# Pure-JAX f32 reference (canonical, unpadded params) for validation
# ----------------------------------------------------------------------------
def _conv_block_ref(x, w, b):
    B, L, cin = x.shape
    K = w.shape[0]
    pad = K // 2
    l_out = (L + 2 * pad - K) // CONV_STRIDE + 1
    xp = jnp.pad(x, ((0, 0), (pad, pad), (0, 0)))
    idx = (jnp.arange(l_out) * CONV_STRIDE)[:, None] + jnp.arange(K)[None, :]
    cols = xp[:, idx, :].reshape(B, l_out, K * cin)
    y = jnp.einsum("blk,kc->blc", cols, w.reshape(K * cin, -1)) + b
    return jnp.maximum(y, 0.0)


def acostic_set_reference(canon, fbank, log_power=None):
    B = fbank.shape[0]
    x = fbank
    if canon["use_power"]:
        p = log_power[:, :, None]
    for li, (wa, ba) in enumerate(canon["acostic"]):
        if canon["use_power"]:
            wp, bp = canon["power"][li]
            p = _conv_block_ref(p, wp, bp)
        x = _conv_block_ref(x, wa, ba)
    out = jnp.concatenate([x, p], axis=-1) if canon["use_power"] else x
    flat = out.reshape(B, -1)
    h = flat @ canon["d1_w"] + canon["d1_b"]
    return h @ canon["d2_w"] + canon["d2_b"]


# ----------------------------------------------------------------------------
if __name__ == "__main__":
    # Scaled-down configuration (module defaults are 80/5/5/128/320/64/69).
    input_dim = 16
    num_layers = 2
    kernel_size = 5
    num_channels = 8
    cnet_out_dim = 16
    output_dim = 8
    acostic_frame_width = 16
    batch = 2

    key = jax.random.PRNGKey(0)
    key, kp, kf, kl = jax.random.split(key, 4)

    canon = init_acostic_set(
        kp, input_dim=input_dim, num_layers=num_layers, kernel_size=kernel_size,
        num_channels=num_channels, cnet_out_dim=cnet_out_dim,
        output_dim=output_dim, acostic_frame_width=acostic_frame_width,
        use_power=True)
    padded = prepare_padded_params(canon, use_bf16=True)

    fbank = jax.random.normal(kf, (batch, acostic_frame_width, input_dim),
                              jnp.float32)
    log_power = jax.random.normal(kl, (batch, acostic_frame_width), jnp.float32)

    out = acostic_set_forward(padded, fbank, log_power)
    out = jax.block_until_ready(out)

    assert out.shape == (batch, output_dim), out.shape
    assert out.dtype == jnp.float32
    assert bool(jnp.all(jnp.isfinite(out)))

    # Validate against the pure-JAX f32 reference (loose tolerance accounts for
    # the bf16 activations/weights used inside the kernels).
    ref = acostic_set_reference(canon, fbank, log_power)
    max_err = float(jnp.max(jnp.abs(out - ref)))
    assert bool(jnp.allclose(out, ref, rtol=5e-2, atol=5e-3)), max_err

    print("KERNEL_OK")
</pallas_src>

<mosaic_0001>
module attributes {stable_mosaic.version = 11 : i64} {
  func.func @_conv_kernel(%arg0: i32, %arg1: memref<1x10x512xbf16, #tpu.memory_space<vmem>>, %arg2: memref<5x256x256xbf16, #tpu.memory_space<vmem>>, %arg3: memref<1x256xf32, #tpu.memory_space<vmem>>, %arg4: memref<1x8x256xbf16, #tpu.memory_space<vmem>>) attributes {dimension_semantics = [#tpu.dimension_semantics<parallel>], iteration_bounds = array<i64: 2>, scalar_prefetch = 0 : i64, scratch_operands = 0 : i64, tpu.core_type = #tpu.core_type<tc>, window_params = [{transform_indices = @transform_0, window_bounds = array<i64: 1, 10, 512>}, {pipeline_mode = #tpu.pipeline_mode<synchronous>, transform_indices = @transform_1, window_bounds = array<i64: 5, 256, 256>}, {pipeline_mode = #tpu.pipeline_mode<synchronous>, transform_indices = @transform_2, window_bounds = array<i64: 1, 256>}, {transform_indices = @transform_3, window_bounds = array<i64: 1, 8, 256>}]} {
    %cst = arith.constant 0.000000e+00 : f32
    %0 = vector.broadcast %cst : f32 to vector<8x256xf32>
    %c0 = arith.constant 0 : index
    %c0_0 = arith.constant 0 : index
    %c0_1 = arith.constant 0 : index
    %1 = vector.load %arg1[%c0, %c0_0, %c0_1] : memref<1x10x512xbf16, #tpu.memory_space<vmem>>, vector<1x8x256xbf16>
    %2 = vector.shape_cast %1 : vector<1x8x256xbf16> to vector<8x256xbf16>
    %c0_2 = arith.constant 0 : index
    %c0_3 = arith.constant 0 : index
    %c0_4 = arith.constant 0 : index
    %3 = vector.load %arg2[%c0_2, %c0_3, %c0_4] : memref<5x256x256xbf16, #tpu.memory_space<vmem>>, vector<1x256x256xbf16>
    %4 = vector.shape_cast %3 : vector<1x256x256xbf16> to vector<256x256xbf16>
    %cst_5 = arith.constant dense<0.000000e+00> : vector<8x256xf32>
    %5 = tpu.matmul %2, %4, %cst_5 {dimension_numbers = #tpu.dot_dimension_numbers<[1], [0], [0], [1], [0, 0, 1, 1], [], []>} : vector<8x256xbf16>, vector<256x256xbf16>, vector<8x256xf32> -> vector<8x256xf32>
    %6 = arith.addf %0, %5 : vector<8x256xf32>
    %c0_6 = arith.constant 0 : index
    %c0_7 = arith.constant 0 : index
    %c256 = arith.constant 256 : index
    %7 = vector.load %arg1[%c0_6, %c0_7, %c256] : memref<1x10x512xbf16, #tpu.memory_space<vmem>>, vector<1x8x256xbf16>
    %8 = vector.shape_cast %7 : vector<1x8x256xbf16> to vector<8x256xbf16>
    %c1 = arith.constant 1 : index
    %c0_8 = arith.constant 0 : index
    %c0_9 = arith.constant 0 : index
    %9 = vector.load %arg2[%c1, %c0_8, %c0_9] : memref<5x256x256xbf16, #tpu.memory_space<vmem>>, vector<1x256x256xbf16>
    %10 = vector.shape_cast %9 : vector<1x256x256xbf16> to vector<256x256xbf16>
    %cst_10 = arith.constant dense<0.000000e+00> : vector<8x256xf32>
    %11 = tpu.matmul %8, %10, %cst_10 {dimension_numbers = #tpu.dot_dimension_numbers<[1], [0], [0], [1], [0, 0, 1, 1], [], []>} : vector<8x256xbf16>, vector<256x256xbf16>, vector<8x256xf32> -> vector<8x256xf32>
    %12 = arith.addf %6, %11 : vector<8x256xf32>
    %c0_11 = arith.constant 0 : index
    %c1_12 = arith.constant 1 : index
    %c0_13 = arith.constant 0 : index
    %13 = vector.load %arg1[%c0_11, %c1_12, %c0_13] : memref<1x10x512xbf16, #tpu.memory_space<vmem>>, vector<1x8x256xbf16>
    %14 = vector.shape_cast %13 : vector<1x8x256xbf16> to vector<8x256xbf16>
    %c2 = arith.constant 2 : index
    %c0_14 = arith.constant 0 : index
    %c0_15 = arith.constant 0 : index
    %15 = vector.load %arg2[%c2, %c0_14, %c0_15] : memref<5x256x256xbf16, #tpu.memory_space<vmem>>, vector<1x256x256xbf16>
    %16 = vector.shape_cast %15 : vector<1x256x256xbf16> to vector<256x256xbf16>
    %cst_16 = arith.constant dense<0.000000e+00> : vector<8x256xf32>
    %17 = tpu.matmul %14, %16, %cst_16 {dimension_numbers = #tpu.dot_dimension_numbers<[1], [0], [0], [1], [0, 0, 1, 1], [], []>} : vector<8x256xbf16>, vector<256x256xbf16>, vector<8x256xf32> -> vector<8x256xf32>
    %18 = arith.addf %12, %17 : vector<8x256xf32>
    %c0_17 = arith.constant 0 : index
    %c1_18 = arith.constant 1 : index
    %c256_19 = arith.constant 256 : index
    %19 = vector.load %arg1[%c0_17, %c1_18, %c256_19] : memref<1x10x512xbf16, #tpu.memory_space<vmem>>, vector<1x8x256xbf16>
    %20 = vector.shape_cast %19 : vector<1x8x256xbf16> to vector<8x256xbf16>
    %c3 = arith.constant 3 : index
    %c0_20 = arith.constant 0 : index
    %c0_21 = arith.constant 0 : index
    %21 = vector.load %arg2[%c3, %c0_20, %c0_21] : memref<5x256x256xbf16, #tpu.memory_space<vmem>>, vector<1x256x256xbf16>
    %22 = vector.shape_cast %21 : vector<1x256x256xbf16> to vector<256x256xbf16>
    %cst_22 = arith.constant dense<0.000000e+00> : vector<8x256xf32>
    %23 = tpu.matmul %20, %22, %cst_22 {dimension_numbers = #tpu.dot_dimension_numbers<[1], [0], [0], [1], [0, 0, 1, 1], [], []>} : vector<8x256xbf16>, vector<256x256xbf16>, vector<8x256xf32> -> vector<8x256xf32>
    %24 = arith.addf %18, %23 : vector<8x256xf32>
    %c0_23 = arith.constant 0 : index
    %c2_24 = arith.constant 2 : index
    %c0_25 = arith.constant 0 : index
    %25 = vector.load %arg1[%c0_23, %c2_24, %c0_25] : memref<1x10x512xbf16, #tpu.memory_space<vmem>>, vector<1x8x256xbf16>
    %26 = vector.shape_cast %25 : vector<1x8x256xbf16> to vector<8x256xbf16>
    %c4 = arith.constant 4 : index
    %c0_26 = arith.constant 0 : index
    %c0_27 = arith.constant 0 : index
    %27 = vector.load %arg2[%c4, %c0_26, %c0_27] : memref<5x256x256xbf16, #tpu.memory_space<vmem>>, vector<1x256x256xbf16>
    %28 = vector.shape_cast %27 : vector<1x256x256xbf16> to vector<256x256xbf16>
    %cst_28 = arith.constant dense<0.000000e+00> : vector<8x256xf32>
    %29 = tpu.matmul %26, %28, %cst_28 {dimension_numbers = #tpu.dot_dimension_numbers<[1], [0], [0], [1], [0, 0, 1, 1], [], []>} : vector<8x256xbf16>, vector<256x256xbf16>, vector<8x256xf32> -> vector<8x256xf32>
    %30 = arith.addf %24, %29 : vector<8x256xf32>
    %c0_29 = arith.constant 0 : index
    %c0_30 = arith.constant 0 : index
    %31 = vector.load %arg3[%c0_29, %c0_30] : memref<1x256xf32, #tpu.memory_space<vmem>>, vector<1x256xf32>
    %32 = vector.broadcast %31 : vector<1x256xf32> to vector<8x256xf32>
    %33 = arith.addf %30, %32 : vector<8x256xf32>
    %cst_31 = arith.constant 0.000000e+00 : f32
    %34 = vector.broadcast %cst_31 : f32 to vector<8x256xf32>
    %35 = arith.maximumf %33, %34 : vector<8x256xf32>
    %36 = arith.truncf %35 : vector<8x256xf32> to vector<8x256xbf16>
    %c0_32 = arith.constant 0 : index
    %c0_33 = arith.constant 0 : index
    %c0_34 = arith.constant 0 : index
    %37 = vector.load %arg4[%c0_32, %c0_33, %c0_34] : memref<1x8x256xbf16, #tpu.memory_space<vmem>>, vector<1x8x256xbf16>
    %38 = vector.shape_cast %37 : vector<1x8x256xbf16> to vector<8x256xbf16>
    %39 = vector.shape_cast %36 : vector<8x256xbf16> to vector<1x8x256xbf16>
    tpu.vector_store %arg4[%c0_32, %c0_33, %c0_34], %39 {strides = array<i32>} : memref<1x8x256xbf16, #tpu.memory_space<vmem>>, vector<1x8x256xbf16>,
    return
  }
  func.func @transform_0(%arg0: i32) -> (i32, i32, i32) {
    %c0_i32 = arith.constant 0 : i32
    %c0_i32_0 = arith.constant 0 : i32
    %c0_i32_1 = arith.constant 0 : i32
    return %arg0, %c0_i32, %c0_i32_0 : i32, i32, i32
  }
  func.func @transform_1(%arg0: i32) -> (i32, i32, i32) {
    %c0_i32 = arith.constant 0 : i32
    %c0_i32_0 = arith.constant 0 : i32
    %c0_i32_1 = arith.constant 0 : i32
    %c0_i32_2 = arith.constant 0 : i32
    return %c0_i32, %c0_i32_0, %c0_i32_1 : i32, i32, i32
  }
  func.func @transform_2(%arg0: i32) -> (i32, i32) {
    %c0_i32 = arith.constant 0 : i32
    %c0_i32_0 = arith.constant 0 : i32
    %c0_i32_1 = arith.constant 0 : i32
    return %c0_i32, %c0_i32_0 : i32, i32
  }
  func.func @transform_3(%arg0: i32) -> (i32, i32, i32) {
    %c0_i32 = arith.constant 0 : i32
    %c0_i32_0 = arith.constant 0 : i32
    %c0_i32_1 = arith.constant 0 : i32
    return %arg0, %c0_i32, %c0_i32_0 : i32, i32, i32
  }
}

</mosaic_0001>

<llo_original>
// kernel: tpu_custom_call.1
$region0: #{tpu_custom_call.1}
  #allocation0 [shape = 'u32[]', space=smem, size = 0x4, offset = 0x4, fixed_abs, tag = 'smem constant byte address 0x4 - core index']
  #allocation1 [shape = 'u32[144,128]{1,0:T(1,128)}', space=vmem, size = 0x12000, scoped, tag = 'internal scratch']
  %s0 = inlined_call_operand.vmem [shape: bf16[2,10,512], index: 0, kind: input, shape index: {}]
  %s1 = inlined_call_operand.hbm [shape: bf16[5,256,256], index: 1, kind: input, shape index: {}]
  %s2 = inlined_call_operand.vmem [shape: f32[1,256], index: 2, kind: input, shape index: {}]
  %s3 = inlined_call_operand.hbm [shape: bf16[2,8,256], index: 3, kind: output, shape index: {}]
  %s4 = sld [smem:[#allocation0]]
  $region49: #{tpu_custom_call.1} parent=0
    _
  %s6 = ssub.s32 1, %s4
  %s7 = scalar_select 0, %s6, %s4
  $region1: #{tpu_custom_call.1} parent=0
    #allocation2 [shape = 'u8[655360]{0}', space=vmem, size = 0xa0000, scoped, tag = 'input window, operand 1, single buffered']
    #allocation3 [shape = 's32[2]{0}', space=sflag, size = 0x8, scoped, tag = 'scoped memory for tpu_custom_call.1']
    #allocation4 [shape = 's32[2]{0}', space=sflag, size = 0x8, scoped, tag = 'scoped memory for tpu_custom_call.1']
    #allocation5 [shape = 'u8[8192]{0}', space=vmem, size = 0x2000, scoped, tag = 'output window, operand 0']
    %8 = vsyncpa [#allocation3], 0
    %9 = vsyncpa [#allocation4], 0
    %s10 = scalar_lea.sflag [#allocation4], 1
    %11 = vsyncpa %s10, 0
    loop: start=0, step=1, limit=4
    $region2: #{tpu_custom_call.1} parent=1 // loop_pre_header
      _
    $region3: #{tpu_custom_call.1} parent=1 // loop_header
      %s13 = sphi 0, %s17
      %p14 = scmp.ge.s32.totalorder %s13, 4
      %s23 = sphi 0, %s25
      %s26 = sphi 0, %s23
      %s27 = sphi 0, %s26
      %s43 = sphi 0, %s27
      %s47 = sphi 0, %s47
      %s49 = sphi 0, %s47
      %s50 = sphi 0, %s49
      %s64 = sphi 0, %s50
      %s68 = sphi 0, %s68
      %s70 = sphi 0, %s68
      %s71 = sphi 0, %s70
      %s85 = sphi 0, %s71
      %s91 = sphi 0, %s93
      %s94 = sphi 0, %s91
      %s95 = sphi 0, %s94
      %s111 = sphi 0, %s95
    $region4: #{tpu_custom_call.1} parent=1 // loop_header_branch
      %16 = sbr.rel (%p14) target = $region8
    $region5: #{tpu_custom_call.1} parent=1 // loop_body
      %s18 = ssub.s32 %s13, 1
      %s19 = ssub.s32 %s13, 2
      %s20 = sadd.s32 %s13, 1
      %s21 = ssub.s32 %s13, %s20
      %p22 = scmp.eq.s32.totalorder %s21, 0
      %s24 = sadd.s32 %s23, 1
      %s25 = scalar_select %p22, %s23, %s24
      %p28 = pneg %p22
      %p29 = scmp.eq.s32.totalorder %s13, 1
      %p30 = por %p28, %p29
      %p31 = scmp.ne.s32.totalorder %s23, %s26
      %p32 = scmp.eq.s32.totalorder %s13, 0
      %p33 = por %p31, %p32
      %p34 = scmp.ne.s32.totalorder %s23, %s26
      %p35 = scmp.eq.s32.totalorder %s18, 1
      %p36 = por %p34, %p35
      %p37 = scmp.ne.s32.totalorder %s26, %s27
      %p38 = scmp.eq.s32.totalorder %s18, 0
      %p39 = por %p37, %p38
      %p40 = scmp.ne.s32.totalorder %s26, %s27
      %p41 = scmp.eq.s32.totalorder %s19, 1
      %p42 = por %p40, %p41
      %p44 = scmp.ne.s32.totalorder %s27, %s43
      %p45 = scmp.eq.s32.totalorder %s19, 0
      %p46 = por %p44, %p45
      %s48 = sadd.s32 %s47, 1
      %p51 = scmp.eq.s32.totalorder %s13, 1
      %p52 = scmp.ne.s32.totalorder %s47, %s49
      %p53 = scmp.eq.s32.totalorder %s13, 0
      %p54 = por %p52, %p53
      %p55 = scmp.ne.s32.totalorder %s47, %s49
      %p56 = scmp.eq.s32.totalorder %s18, 1
      %p57 = por %p55, %p56
      %p58 = scmp.ne.s32.totalorder %s49, %s50
      %p59 = scmp.eq.s32.totalorder %s18, 0
      %p60 = por %p58, %p59
      %p61 = scmp.ne.s32.totalorder %s49, %s50
      %p62 = scmp.eq.s32.totalorder %s19, 1
      %p63 = por %p61, %p62
      %p65 = scmp.ne.s32.totalorder %s50, %s64
      %p66 = scmp.eq.s32.totalorder %s19, 0
      %p67 = por %p65, %p66
      %s69 = sadd.s32 %s68, 1
      %p72 = scmp.eq.s32.totalorder %s13, 1
      %p73 = scmp.ne.s32.totalorder %s68, %s70
      %p74 = scmp.eq.s32.totalorder %s13, 0
      %p75 = por %p73, %p74
      %p76 = scmp.ne.s32.totalorder %s68, %s70
      %p77 = scmp.eq.s32.totalorder %s18, 1
      %p78 = por %p76, %p77
      %p79 = scmp.ne.s32.totalorder %s70, %s71
      %p80 = scmp.eq.s32.totalorder %s18, 0
      %p81 = por %p79, %p80
      %p82 = scmp.ne.s32.totalorder %s70, %s71
      %p83 = scmp.eq.s32.totalorder %s19, 1
      %p84 = por %p82, %p83
      %p86 = scmp.ne.s32.totalorder %s71, %s85
      %p87 = scmp.eq.s32.totalorder %s19, 0
      %p88 = por %p86, %p87
      %s89 = ssub.s32 %s13, %s20
      %p90 = scmp.eq.s32.totalorder %s89, 0
      %s92 = sadd.s32 %s91, 1
      %s93 = scalar_select %p90, %s91, %s92
      %p96 = pneg %p90
      %p97 = scmp.eq.s32.totalorder %s13, 1
      %p98 = por %p96, %p97
      %p99 = scmp.ne.s32.totalorder %s91, %s94
      %p100 = scmp.eq.s32.totalorder %s13, 0
      %p101 = por %p99, %p100
      %p102 = scmp.ne.s32.totalorder %s91, %s94
      %p103 = scmp.eq.s32.totalorder %s18, 1
      %p104 = por %p102, %p103
      %p105 = scmp.ne.s32.totalorder %s94, %s95
      %p106 = scmp.eq.s32.totalorder %s18, 0
      %p107 = por %p105, %p106
      %p108 = scmp.ne.s32.totalorder %s94, %s95
      %p109 = scmp.eq.s32.totalorder %s19, 1
      %p110 = por %p108, %p109
      %p112 = scmp.ne.s32.totalorder %s95, %s111
      %p113 = scmp.eq.s32.totalorder %s19, 0
      %p114 = por %p112, %p113
      %p115 = scmp.le.s32.totalorder 1, %s13
      %p116 = scmp.lt.s32.totalorder %s13, 3
      %p117 = pnand %p115, %p116
      %p118 = pneg %p117
      // Predicated region
      $region9: #{tpu_custom_call.1} parent=5 // pred_check
        _
      $region10: #{tpu_custom_call.1} parent=5 // pred_check_branch
        %120 = sbr.rel (%p117) target = $region12
      $region11: #{tpu_custom_call.1} parent=5 // pred_region
        %s121 = ssub.s32 %s13, 1
        // Predicated region
        $region13: #{tpu_custom_call.1} parent=11 // pred_check
          %p122 = pneg %p60
        $region14: #{tpu_custom_call.1} parent=11 // pred_check_branch
          %124 = sbr.rel (%p122) target = $region16
        $region15: #{tpu_custom_call.1} parent=11 // pred_region
          %s126 = ssub.s32 20480, 20480
          %127 = vsyncadd [#allocation3], %s126
          %s128 = sshll.u32 [#allocation2], 4
          %s129 = int_to_ptr.vmem [resolvable:$true] %s128
          %134 = dma.hbm_to_vmem [thread:$0]  %s1, 20480, %s129, [#allocation3], 128, 128, 8
        $region16: #{tpu_custom_call.1} parent=11 // pred_fallthru
          _
        // Predicated region
        $region17: #{tpu_custom_call.1} parent=11 // pred_check
          %p135 = pneg %p81
        $region18: #{tpu_custom_call.1} parent=11 // pred_check_branch
          %137 = sbr.rel (%p135) target = $region20
        $region19: #{tpu_custom_call.1} parent=11 // pred_region
          _
        $region20: #{tpu_custom_call.1} parent=11 // pred_fallthru
          _
      $region12: #{tpu_custom_call.1} parent=5 // pred_fallthru
        _
      %p138 = scmp.lt.s32.totalorder %s13, 2
      // Predicated region
      $region21: #{tpu_custom_call.1} parent=5 // pred_check
        %p139 = pneg %p138
      $region22: #{tpu_custom_call.1} parent=5 // pred_check_branch
        %141 = sbr.rel (%p139) target = $region24
      $region23: #{tpu_custom_call.1} parent=5 // pred_region
        // Predicated region
        $region25: #{tpu_custom_call.1} parent=23 // pred_check
          %p142 = pneg %p33
        $region26: #{tpu_custom_call.1} parent=23 // pred_check_branch
          %144 = sbr.rel (%p142) target = $region28
        $region27: #{tpu_custom_call.1} parent=23 // pred_region
          %p145 = scmp.lt.s32.totalorder %s13, 1
          %s146 = scalar_select %p145, %s13, 1
          %s147 = smul.addr %s146, 8
          %s148 = smul.addr %s147, 4
          %s149 = scalar_lea.vmem %s0, %s148
        $region28: #{tpu_custom_call.1} parent=23 // pred_fallthru
          _
      $region24: #{tpu_custom_call.1} parent=5 // pred_fallthru
        _
      %p150 = scmp.le.s32.totalorder 1, %s13
      %p151 = scmp.lt.s32.totalorder %s13, 3
      %p152 = pnand %p150, %p151
      %p153 = pneg %p152
      // Predicated region
      $region29: #{tpu_custom_call.1} parent=5 // pred_check
        _
      $region30: #{tpu_custom_call.1} parent=5 // pred_check_branch
        %155 = sbr.rel (%p152) target = $region32
      $region31: #{tpu_custom_call.1} parent=5 // pred_region
        %s156 = ssub.s32 %s13, 1
        // Predicated region
        $region33: #{tpu_custom_call.1} parent=31 // pred_check
          %p157 = pneg %p60
        $region34: #{tpu_custom_call.1} parent=31 // pred_check_branch
          %159 = sbr.rel (%p157) target = $region36
        $region35: #{tpu_custom_call.1} parent=31 // pred_region
          %160 = dma.done [#allocation3], 20480
        $region36: #{tpu_custom_call.1} parent=31 // pred_fallthru
          _
        %p161 = scmp.lt.s32.totalorder %s18, 1
        %s162 = scalar_select %p161, %s18, 1
        %s163 = smul.addr %s162, 8
        %s164 = smul.addr %s163, 4
        %s165 = scalar_lea.vmem %s0, %s164
        %p166 = pneg %p39
        %p167 = pneg %p36
        %p168 = pneg %p60
        %p169 = pneg %p57
        %p170 = pneg %p81
        %p171 = pneg %p78
        %p172 = pneg %p107
        %p173 = pneg %p104
        %s174 = sand.u32 %s94, 1
        %s175 = scalar_lea.sflag [#allocation4], %s174
        %s176 = sand.u32 %s94, 1
        %s177 = smul.addr %s176, 8
        %s178 = scalar_lea.vmem [#allocation5], %s177
        %p179 = scmp.lt.s32.totalorder %s18, 1
        %s180 = scalar_select %p179, %s18, 1
        %s181 = smul.addr %s180, 8
        %s182 = smul.addr %s181, 4
        %s183 = scalar_lea.vmem %s0, %s182
        %v184 = vld [vmem:[%s183] sm:$0xff]
        %v185 = vld [vmem:[#allocation2] sm:$0xff]
        %v186 = vld [vmem:[#allocation2 + $0x8] sm:$0xff]
        %v187 = vld [vmem:[#allocation2 + $0x10] sm:$0xff]
        %v188 = vld [vmem:[#allocation2 + $0x18] sm:$0xff]
        %v189 = vld [vmem:[#allocation2 + $0x20] sm:$0xff]
        %v190 = vld [vmem:[#allocation2 + $0x28] sm:$0xff]
        %v191 = vld [vmem:[#allocation2 + $0x30] sm:$0xff]
        %v192 = vld [vmem:[#allocation2 + $0x38] sm:$0xff]
        %v193 = vld [vmem:[#allocation2 + $0x40] sm:$0xff]
        %v194 = vld [vmem:[#allocation2 + $0x48] sm:$0xff]
        %v195 = vld [vmem:[#allocation2 + $0x50] sm:$0xff]
        %v196 = vld [vmem:[#allocation2 + $0x58] sm:$0xff]
        %v197 = vld [vmem:[#allocation2 + $0x60] sm:$0xff]
        %v198 = vld [vmem:[#allocation2 + $0x68] sm:$0xff]
        %v199 = vld [vmem:[#allocation2 + $0x70] sm:$0xff]
        %v200 = vld [vmem:[#allocation2 + $0x78] sm:$0xff]
        %v201 = vld [vmem:[#allocation2 + $0x80] sm:$0xff]
        %v202 = vld [vmem:[#allocation2 + $0x88] sm:$0xff]
        %v203 = vld [vmem:[#allocation2 + $0x90] sm:$0xff]
        %v204 = vld [vmem:[#allocation2 + $0x98] sm:$0xff]
        %v205 = vld [vmem:[#allocation2 + $0xa0] sm:$0xff]
        %v206 = vld [vmem:[#allocation2 + $0xa8] sm:$0xff]
        %v207 = vld [vmem:[#allocation2 + $0xb0] sm:$0xff]
        %v208 = vld [vmem:[#allocation2 + $0xb8] sm:$0xff]
        %v209 = vld [vmem:[#allocation2 + $0xc0] sm:$0xff]
        %v210 = vld [vmem:[#allocation2 + $0xc8] sm:$0xff]
        %v211 = vld [vmem:[#allocation2 + $0xd0] sm:$0xff]
        %v212 = vld [vmem:[#allocation2 + $0xd8] sm:$0xff]
        %v213 = vld [vmem:[#allocation2 + $0xe0] sm:$0xff]
        %v214 = vld [vmem:[#allocation2 + $0xe8] sm:$0xff]
        %v215 = vld [vmem:[#allocation2 + $0xf0] sm:$0xff]
        %v216 = vld [vmem:[#allocation2 + $0xf8] sm:$0xff]
        %v217 = vld [vmem:[%s183 + $0x8] sm:$0xff]
        %s218 = scalar_lea.vmem [#allocation2], 256
        %v219 = vld [vmem:[%s218] sm:$0xff]
        %v220 = vld [vmem:[%s218 + $0x8] sm:$0xff]
        %v221 = vld [vmem:[%s218 + $0x10] sm:$0xff]
        %v222 = vld [vmem:[%s218 + $0x18] sm:$0xff]
        %v223 = vld [vmem:[%s218 + $0x20] sm:$0xff]
        %v224 = vld [vmem:[%s218 + $0x28] sm:$0xff]
        %v225 = vld [vmem:[%s218 + $0x30] sm:$0xff]
        %v226 = vld [vmem:[%s218 + $0x38] sm:$0xff]
        %v227 = vld [vmem:[%s218 + $0x40] sm:$0xff]
        %v228 = vld [vmem:[%s218 + $0x48] sm:$0xff]
        %v229 = vld [vmem:[%s218 + $0x50] sm:$0xff]
        %v230 = vld [vmem:[%s218 + $0x58] sm:$0xff]
        %v231 = vld [vmem:[%s218 + $0x60] sm:$0xff]
        %v232 = vld [vmem:[%s218 + $0x68] sm:$0xff]
        %v233 = vld [vmem:[%s218 + $0x70] sm:$0xff]
        %v234 = vld [vmem:[%s218 + $0x78] sm:$0xff]
        %v235 = vld [vmem:[%s218 + $0x80] sm:$0xff]
        %v236 = vld [vmem:[%s218 + $0x88] sm:$0xff]
        %v237 = vld [vmem:[%s218 + $0x90] sm:$0xff]
        %v238 = vld [vmem:[%s218 + $0x98] sm:$0xff]
        %v239 = vld [vmem:[%s218 + $0xa0] sm:$0xff]
        %v240 = vld [vmem:[%s218 + $0xa8] sm:$0xff]
        %v241 = vld [vmem:[%s218 + $0xb0] sm:$0xff]
        %v242 = vld [vmem:[%s218 + $0xb8] sm:$0xff]
        %v243 = vld [vmem:[%s218 + $0xc0] sm:$0xff]
        %v244 = vld [vmem:[%s218 + $0xc8] sm:$0xff]
        %v245 = vld [vmem:[%s218 + $0xd0] sm:$0xff]
        %v246 = vld [vmem:[%s218 + $0xd8] sm:$0xff]
        %v247 = vld [vmem:[%s218 + $0xe0] sm:$0xff]
        %v248 = vld [vmem:[%s218 + $0xe8] sm:$0xff]
        %v249 = vld [vmem:[%s218 + $0xf0] sm:$0xff]
        %v250 = vld [vmem:[%s218 + $0xf8] sm:$0xff]
        %v252 = vunpack.c.l.b16 %v217
        %v253 = vunpack.c.h.b16 %v217
        %v254 = vpack.c.b16 %v252, %v252
        %v255 = vpack.c.b16 %v253, %v253
        %v290 = vunpack.c.l.b16 %v219
        %v291 = vunpack.c.h.b16 %v219
        %v292 = vunpack.c.l.b16 %v220
        %v293 = vunpack.c.h.b16 %v220
        %v294 = vunpack.c.l.b16 %v221
        %v295 = vunpack.c.h.b16 %v221
        %v296 = vunpack.c.l.b16 %v222
        %v297 = vunpack.c.h.b16 %v222
        %v298 = vunpack.c.l.b16 %v223
        %v299 = vunpack.c.h.b16 %v223
        %v300 = vunpack.c.l.b16 %v224
        %v301 = vunpack.c.h.b16 %v224
        %v302 = vunpack.c.l.b16 %v225
        %v303 = vunpack.c.h.b16 %v225
        %v304 = vunpack.c.l.b16 %v226
        %v305 = vunpack.c.h.b16 %v226
        %v306 = vunpack.c.l.b16 %v227
        %v307 = vunpack.c.h.b16 %v227
        %v308 = vunpack.c.l.b16 %v228
        %v309 = vunpack.c.h.b16 %v228
        %v310 = vunpack.c.l.b16 %v229
        %v311 = vunpack.c.h.b16 %v229
        %v312 = vunpack.c.l.b16 %v230
        %v313 = vunpack.c.h.b16 %v230
        %v314 = vunpack.c.l.b16 %v231
        %v315 = vunpack.c.h.b16 %v231
        %v316 = vunpack.c.l.b16 %v232
        %v317 = vunpack.c.h.b16 %v232
        %v318 = vunpack.c.l.b16 %v233
        %v319 = vunpack.c.h.b16 %v233
        %v320 = vunpack.c.l.b16 %v234
        %v321 = vunpack.c.h.b16 %v234
        %v322 = vunpack.c.l.b16 %v235
        %v323 = vunpack.c.h.b16 %v235
        %v324 = vunpack.c.l.b16 %v236
        %v325 = vunpack.c.h.b16 %v236
        %v326 = vunpack.c.l.b16 %v237
        %v327 = vunpack.c.h.b16 %v237
        %v328 = vunpack.c.l.b16 %v238
        %v329 = vunpack.c.h.b16 %v238
        %v330 = vunpack.c.l.b16 %v239
        %v331 = vunpack.c.h.b16 %v239
        %v332 = vunpack.c.l.b16 %v240
        %v333 = vunpack.c.h.b16 %v240
        %v334 = vunpack.c.l.b16 %v241
        %v335 = vunpack.c.h.b16 %v241
        %v336 = vunpack.c.l.b16 %v242
        %v337 = vunpack.c.h.b16 %v242
        %v338 = vunpack.c.l.b16 %v243
        %v339 = vunpack.c.h.b16 %v243
        %v340 = vunpack.c.l.b16 %v244
        %v341 = vunpack.c.h.b16 %v244
        %v342 = vunpack.c.l.b16 %v245
        %v343 = vunpack.c.h.b16 %v245
        %v344 = vunpack.c.l.b16 %v246
        %v345 = vunpack.c.h.b16 %v246
        %v346 = vunpack.c.l.b16 %v247
        %v347 = vunpack.c.h.b16 %v247
        %v348 = vunpack.c.l.b16 %v248
        %v349 = vunpack.c.h.b16 %v248
        %v350 = vunpack.c.l.b16 %v249
        %v351 = vunpack.c.h.b16 %v249
        %v352 = vunpack.c.l.b16 %v250
        %v353 = vunpack.c.h.b16 %v250
        %v354 = vpack.c.b16 %v292, %v290
        %v355 = vpack.c.b16 %v293, %v291
        %v356 = vpack.c.b16 %v296, %v294
        %v357 = vpack.c.b16 %v297, %v295
        %v358 = vpack.c.b16 %v300, %v298
        %v359 = vpack.c.b16 %v301, %v299
        %v360 = vpack.c.b16 %v304, %v302
        %v361 = vpack.c.b16 %v305, %v303
        %v362 = vpack.c.b16 %v308, %v306
        %v363 = vpack.c.b16 %v309, %v307
        %v364 = vpack.c.b16 %v312, %v310
        %v365 = vpack.c.b16 %v313, %v311
        %v366 = vpack.c.b16 %v316, %v314
        %v367 = vpack.c.b16 %v317, %v315
        %v368 = vpack.c.b16 %v320, %v318
        %v369 = vpack.c.b16 %v321, %v319
        %v370 = vpack.c.b16 %v324, %v322
        %v371 = vpack.c.b16 %v325, %v323
        %v372 = vpack.c.b16 %v328, %v326
        %v373 = vpack.c.b16 %v329, %v327
        %v374 = vpack.c.b16 %v332, %v330
        %v375 = vpack.c.b16 %v333, %v331
        %v376 = vpack.c.b16 %v336, %v334
        %v377 = vpack.c.b16 %v337, %v335
        %v378 = vpack.c.b16 %v340, %v338
        %v379 = vpack.c.b16 %v341, %v339
        %v380 = vpack.c.b16 %v344, %v342
        %v381 = vpack.c.b16 %v345, %v343
        %v382 = vpack.c.b16 %v348, %v346
        %v383 = vpack.c.b16 %v349, %v347
        %v384 = vpack.c.b16 %v352, %v350
        %v385 = vpack.c.b16 %v353, %v351
        %418 = vmatprep.subr.bf16.mxu0 %v355
        %419 = vmatpush1.bf16.msra.mxu0 %v354
        %420 = vmatprep.subr.bf16.mxu0 %v357
        %421 = vmatpush1.bf16.msra.mxu0 %v356
        %422 = vmatprep.subr.bf16.mxu0 %v359
        %423 = vmatpush1.bf16.msra.mxu0 %v358
        %424 = vmatprep.subr.bf16.mxu0 %v361
        %425 = vmatpush1.bf16.msra.mxu0 %v360
        %426 = vmatprep.subr.bf16.mxu0 %v363
        %427 = vmatpush1.bf16.msra.mxu0 %v362
        %428 = vmatprep.subr.bf16.mxu0 %v365
        %429 = vmatpush1.bf16.msra.mxu0 %v364
        %430 = vmatprep.subr.bf16.mxu0 %v367
        %431 = vmatpush1.bf16.msra.mxu0 %v366
        %432 = vmatprep.subr.bf16.mxu0 %v369
        %433 = vmatpush1.bf16.msra.mxu0 %v368
        %434 = vmatprep.subr.bf16.mxu0 %v371
        %435 = vmatpush1.bf16.msra.mxu0 %v370
        %436 = vmatprep.subr.bf16.mxu0 %v373
        %437 = vmatpush1.bf16.msra.mxu0 %v372
        %438 = vmatprep.subr.bf16.mxu0 %v375
        %439 = vmatpush1.bf16.msra.mxu0 %v374
        %440 = vmatprep.subr.bf16.mxu0 %v377
        %441 = vmatpush1.bf16.msra.mxu0 %v376
        %442 = vmatprep.subr.bf16.mxu0 %v379
        %443 = vmatpush1.bf16.msra.mxu0 %v378
        %444 = vmatprep.subr.bf16.mxu0 %v381
        %445 = vmatpush1.bf16.msra.mxu0 %v380
        %446 = vmatprep.subr.bf16.mxu0 %v383
        %447 = vmatpush1.bf16.msra.mxu0 %v382
        %448 = vmatprep.subr.bf16.mxu0 %v385
        %449 = vmatpush1.bf16.msra.mxu0 %v384
        %450 = vmatprep.mubr.bf16.mxu0 %v255
        %451 = vmatmul.mubr.bf16.gmra.mrb[0].mxu0 %v254
        %v452 = vpop.f32.mrb[0].mxu0
        %v453 = vadd.f32 0.0, %v452
        %v454 = vpop.f32.mrb[0].mxu0
        %v455 = vadd.f32 0.0, %v454
        %v456 = vpop.f32.mrb[0].mxu0
        %v457 = vpop.f32.mrb[0].mxu0
        %458 = vdwg.mxu0
        %v460 = vunpack.c.l.b16 %v184
        %v461 = vunpack.c.h.b16 %v184
        %v462 = vpack.c.b16 %v460, %v460
        %v463 = vpack.c.b16 %v461, %v461
        %v498 = vunpack.c.l.b16 %v185
        %v499 = vunpack.c.h.b16 %v185
        %v500 = vunpack.c.l.b16 %v186
        %v501 = vunpack.c.h.b16 %v186
        %v502 = vunpack.c.l.b16 %v187
        %v503 = vunpack.c.h.b16 %v187
        %v504 = vunpack.c.l.b16 %v188
        %v505 = vunpack.c.h.b16 %v188
        %v506 = vunpack.c.l.b16 %v189
        %v507 = vunpack.c.h.b16 %v189
        %v508 = vunpack.c.l.b16 %v190
        %v509 = vunpack.c.h.b16 %v190
        %v510 = vunpack.c.l.b16 %v191
        %v511 = vunpack.c.h.b16 %v191
        %v512 = vunpack.c.l.b16 %v192
        %v513 = vunpack.c.h.b16 %v192
        %v514 = vunpack.c.l.b16 %v193
        %v515 = vunpack.c.h.b16 %v193
        %v516 = vunpack.c.l.b16 %v194
        %v517 = vunpack.c.h.b16 %v194
        %v518 = vunpack.c.l.b16 %v195
        %v519 = vunpack.c.h.b16 %v195
        %v520 = vunpack.c.l.b16 %v196
        %v521 = vunpack.c.h.b16 %v196
        %v522 = vunpack.c.l.b16 %v197
        %v523 = vunpack.c.h.b16 %v197
        %v524 = vunpack.c.l.b16 %v198
        %v525 = vunpack.c.h.b16 %v198
        %v526 = vunpack.c.l.b16 %v199
        %v527 = vunpack.c.h.b16 %v199
        %v528 = vunpack.c.l.b16 %v200
        %v529 = vunpack.c.h.b16 %v200
        %v530 = vunpack.c.l.b16 %v201
        %v531 = vunpack.c.h.b16 %v201
        %v532 = vunpack.c.l.b16 %v202
        %v533 = vunpack.c.h.b16 %v202
        %v534 = vunpack.c.l.b16 %v203
        %v535 = vunpack.c.h.b16 %v203
        %v536 = vunpack.c.l.b16 %v204
        %v537 = vunpack.c.h.b16 %v204
        %v538 = vunpack.c.l.b16 %v205
        %v539 = vunpack.c.h.b16 %v205
        %v540 = vunpack.c.l.b16 %v206
        %v541 = vunpack.c.h.b16 %v206
        %v542 = vunpack.c.l.b16 %v207
        %v543 = vunpack.c.h.b16 %v207
        %v544 = vunpack.c.l.b16 %v208
        %v545 = vunpack.c.h.b16 %v208
        %v546 = vunpack.c.l.b16 %v209
        %v547 = vunpack.c.h.b16 %v209
        %v548 = vunpack.c.l.b16 %v210
        %v549 = vunpack.c.h.b16 %v210
        %v550 = vunpack.c.l.b16 %v211
        %v551 = vunpack.c.h.b16 %v211
        %v552 = vunpack.c.l.b16 %v212
        %v553 = vunpack.c.h.b16 %v212
        %v554 = vunpack.c.l.b16 %v213
        %v555 = vunpack.c.h.b16 %v213
        %v556 = vunpack.c.l.b16 %v214
        %v557 = vunpack.c.h.b16 %v214
        %v558 = vunpack.c.l.b16 %v215
        %v559 = vunpack.c.h.b16 %v215
        %v560 = vunpack.c.l.b16 %v216
        %v561 = vunpack.c.h.b16 %v216
        %v562 = vpack.c.b16 %v500, %v498
        %v563 = vpack.c.b16 %v501, %v499
        %v564 = vpack.c.b16 %v504, %v502
        %v565 = vpack.c.b16 %v505, %v503
        %v566 = vpack.c.b16 %v508, %v506
        %v567 = vpack.c.b16 %v509, %v507
        %v568 = vpack.c.b16 %v512, %v510
        %v569 = vpack.c.b16 %v513, %v511
        %v570 = vpack.c.b16 %v516, %v514
        %v571 = vpack.c.b16 %v517, %v515
        %v572 = vpack.c.b16 %v520, %v518
        %v573 = vpack.c.b16 %v521, %v519
        %v574 = vpack.c.b16 %v524, %v522
        %v575 = vpack.c.b16 %v525, %v523
        %v576 = vpack.c.b16 %v528, %v526
        %v577 = vpack.c.b16 %v529, %v527
        %v578 = vpack.c.b16 %v532, %v530
        %v579 = vpack.c.b16 %v533, %v531
        %v580 = vpack.c.b16 %v536, %v534
        %v581 = vpack.c.b16 %v537, %v535
        %v582 = vpack.c.b16 %v540, %v538
        %v583 = vpack.c.b16 %v541, %v539
        %v584 = vpack.c.b16 %v544, %v542
        %v585 = vpack.c.b16 %v545, %v543
        %v586 = vpack.c.b16 %v548, %v546
        %v587 = vpack.c.b16 %v549, %v547
        %v588 = vpack.c.b16 %v552, %v550
        %v589 = vpack.c.b16 %v553, %v551
        %v590 = vpack.c.b16 %v556, %v554
        %v591 = vpack.c.b16 %v557, %v555
        %v592 = vpack.c.b16 %v560, %v558
        %v593 = vpack.c.b16 %v561, %v559
        %626 = vmatprep.subr.bf16.mxu0 %v563
        %627 = vmatpush1.bf16.msra.mxu0 %v562
        %628 = vmatprep.subr.bf16.mxu0 %v565
        %629 = vmatpush1.bf16.msra.mxu0 %v564
        %630 = vmatprep.subr.bf16.mxu0 %v567
        %631 = vmatpush1.bf16.msra.mxu0 %v566
        %632 = vmatprep.subr.bf16.mxu0 %v569
        %633 = vmatpush1.bf16.msra.mxu0 %v568
        %634 = vmatprep.subr.bf16.mxu0 %v571
        %635 = vmatpush1.bf16.msra.mxu0 %v570
        %636 = vmatprep.subr.bf16.mxu0 %v573
        %637 = vmatpush1.bf16.msra.mxu0 %v572
        %638 = vmatprep.subr.bf16.mxu0 %v575
        %639 = vmatpush1.bf16.msra.mxu0 %v574
        %640 = vmatprep.subr.bf16.mxu0 %v577
        %641 = vmatpush1.bf16.msra.mxu0 %v576
        %642 = vmatprep.subr.bf16.mxu0 %v579
        %643 = vmatpush1.bf16.msra.mxu0 %v578
        %644 = vmatprep.subr.bf16.mxu0 %v581
        %645 = vmatpush1.bf16.msra.mxu0 %v580
        %646 = vmatprep.subr.bf16.mxu0 %v583
        %647 = vmatpush1.bf16.msra.mxu0 %v582
        %648 = vmatprep.subr.bf16.mxu0 %v585
        %649 = vmatpush1.bf16.msra.mxu0 %v584
        %650 = vmatprep.subr.bf16.mxu0 %v587
        %651 = vmatpush1.bf16.msra.mxu0 %v586
        %652 = vmatprep.subr.bf16.mxu0 %v589
        %653 = vmatpush1.bf16.msra.mxu0 %v588
        %654 = vmatprep.subr.bf16.mxu0 %v591
        %655 = vmatpush1.bf16.msra.mxu0 %v590
        %656 = vmatprep.subr.bf16.mxu0 %v593
        %657 = vmatpush1.bf16.msra.mxu0 %v592
        %658 = vmatprep.mubr.bf16.mxu0 %v463
        %659 = vmatmul.mubr.bf16.gmra.mrb[0].mxu0 %v462
        %v660 = vpop.f32.mrb[0].mxu0
        %v661 = vadd.f32 %v453, %v660
        %v662 = vpop.f32.mrb[0].mxu0
        %v663 = vadd.f32 %v455, %v662
        %v664 = vpop.f32.mrb[0].mxu0
        %v665 = vpop.f32.mrb[0].mxu0
        %666 = vdwg.mxu0
        %v667 = vld [vmem:[%s183] sm:$0xff]
        %v668 = vld [vmem:[%s183 + $0x10] sm:$0x11]
        %s669 = scalar_lea.vmem [#allocation2], 512
        %v670 = vld [vmem:[%s669] sm:$0xff]
        %v671 = vld [vmem:[%s669 + $0x8] sm:$0xff]
        %v672 = vld [vmem:[%s669 + $0x10] sm:$0xff]
        %v673 = vld [vmem:[%s669 + $0x18] sm:$0xff]
        %v674 = vld [vmem:[%s669 + $0x20] sm:$0xff]
        %v675 = vld [vmem:[%s669 + $0x28] sm:$0xff]
        %v676 = vld [vmem:[%s669 + $0x30] sm:$0xff]
        %v677 = vld [vmem:[%s669 + $0x38] sm:$0xff]
        %v678 = vld [vmem:[%s669 + $0x40] sm:$0xff]
        %v679 = vld [vmem:[%s669 + $0x48] sm:$0xff]
        %v680 = vld [vmem:[%s669 + $0x50] sm:$0xff]
        %v681 = vld [vmem:[%s669 + $0x58] sm:$0xff]
        %v682 = vld [vmem:[%s669 + $0x60] sm:$0xff]
        %v683 = vld [vmem:[%s669 + $0x68] sm:$0xff]
        %v684 = vld [vmem:[%s669 + $0x70] sm:$0xff]
        %v685 = vld [vmem:[%s669 + $0x78] sm:$0xff]
        %v686 = vld [vmem:[%s669 + $0x80] sm:$0xff]
        %v687 = vld [vmem:[%s669 + $0x88] sm:$0xff]
        %v688 = vld [vmem:[%s669 + $0x90] sm:$0xff]
        %v689 = vld [vmem:[%s669 + $0x98] sm:$0xff]
        %v690 = vld [vmem:[%s669 + $0xa0] sm:$0xff]
        %v691 = vld [vmem:[%s669 + $0xa8] sm:$0xff]
        %v692 = vld [vmem:[%s669 + $0xb0] sm:$0xff]
        %v693 = vld [vmem:[%s669 + $0xb8] sm:$0xff]
        %v694 = vld [vmem:[%s669 + $0xc0] sm:$0xff]
        %v695 = vld [vmem:[%s669 + $0xc8] sm:$0xff]
        %v696 = vld [vmem:[%s669 + $0xd0] sm:$0xff]
        %v697 = vld [vmem:[%s669 + $0xd8] sm:$0xff]
        %v698 = vld [vmem:[%s669 + $0xe0] sm:$0xff]
        %v699 = vld [vmem:[%s669 + $0xe8] sm:$0xff]
        %v700 = vld [vmem:[%s669 + $0xf0] sm:$0xff]
        %v701 = vld [vmem:[%s669 + $0xf8] sm:$0xff]
        %v704 = vunpack.c.l.b16 %v667
        %v705 = vunpack.c.h.b16 %v667
        %v706 = vunpack.c.l.b16 %v668
        %v707 = vunpack.c.h.b16 %v668
        %v708 = vpack.c.b16 %v706, %v704
        %v709 = vpack.c.b16 %v707, %v705
        %v711 = vshrl.u32 %v708, 16
        %v713 = vshll.u32 %v708, 16
        %v715 = vrot.slane %v713, 1
        %v716 = vor.u32 %v711, %v715
        %v718 = vshrl.u32 %v709, 16
        %v720 = vshll.u32 %v709, 16
        %v722 = vrot.slane %v720, 1
        %v723 = vor.u32 %v718, %v722
        %v758 = vunpack.c.l.b16 %v670
        %v759 = vunpack.c.h.b16 %v670
        %v760 = vunpack.c.l.b16 %v671
        %v761 = vunpack.c.h.b16 %v671
        %v762 = vunpack.c.l.b16 %v672
        %v763 = vunpack.c.h.b16 %v672
        %v764 = vunpack.c.l.b16 %v673
        %v765 = vunpack.c.h.b16 %v673
        %v766 = vunpack.c.l.b16 %v674
        %v767 = vunpack.c.h.b16 %v674
        %v768 = vunpack.c.l.b16 %v675
        %v769 = vunpack.c.h.b16 %v675
        %v770 = vunpack.c.l.b16 %v676
        %v771 = vunpack.c.h.b16 %v676
        %v772 = vunpack.c.l.b16 %v677
        %v773 = vunpack.c.h.b16 %v677
        %v774 = vunpack.c.l.b16 %v678
        %v775 = vunpack.c.h.b16 %v678
        %v776 = vunpack.c.l.b16 %v679
        %v777 = vunpack.c.h.b16 %v679
        %v778 = vunpack.c.l.b16 %v680
        %v779 = vunpack.c.h.b16 %v680
        %v780 = vunpack.c.l.b16 %v681
        %v781 = vunpack.c.h.b16 %v681
        %v782 = vunpack.c.l.b16 %v682
        %v783 = vunpack.c.h.b16 %v682
        %v784 = vunpack.c.l.b16 %v683
        %v785 = vunpack.c.h.b16 %v683
        %v786 = vunpack.c.l.b16 %v684
        %v787 = vunpack.c.h.b16 %v684
        %v788 = vunpack.c.l.b16 %v685
        %v789 = vunpack.c.h.b16 %v685
        %v790 = vunpack.c.l.b16 %v686
        %v791 = vunpack.c.h.b16 %v686
        %v792 = vunpack.c.l.b16 %v687
        %v793 = vunpack.c.h.b16 %v687
        %v794 = vunpack.c.l.b16 %v688
        %v795 = vunpack.c.h.b16 %v688
        %v796 = vunpack.c.l.b16 %v689
        %v797 = vunpack.c.h.b16 %v689
        %v798 = vunpack.c.l.b16 %v690
        %v799 = vunpack.c.h.b16 %v690
        %v800 = vunpack.c.l.b16 %v691
        %v801 = vunpack.c.h.b16 %v691
        %v802 = vunpack.c.l.b16 %v692
        %v803 = vunpack.c.h.b16 %v692
        %v804 = vunpack.c.l.b16 %v693
        %v805 = vunpack.c.h.b16 %v693
        %v806 = vunpack.c.l.b16 %v694
        %v807 = vunpack.c.h.b16 %v694
        %v808 = vunpack.c.l.b16 %v695
        %v809 = vunpack.c.h.b16 %v695
        %v810 = vunpack.c.l.b16 %v696
        %v811 = vunpack.c.h.b16 %v696
        %v812 = vunpack.c.l.b16 %v697
        %v813 = vunpack.c.h.b16 %v697
        %v814 = vunpack.c.l.b16 %v698
        %v815 = vunpack.c.h.b16 %v698
        %v816 = vunpack.c.l.b16 %v699
        %v817 = vunpack.c.h.b16 %v699
        %v818 = vunpack.c.l.b16 %v700
        %v819 = vunpack.c.h.b16 %v700
        %v820 = vunpack.c.l.b16 %v701
        %v821 = vunpack.c.h.b16 %v701
        %v822 = vpack.c.b16 %v760, %v758
        %v823 = vpack.c.b16 %v761, %v759
        %v824 = vpack.c.b16 %v764, %v762
        %v825 = vpack.c.b16 %v765, %v763
        %v826 = vpack.c.b16 %v768, %v766
        %v827 = vpack.c.b16 %v769, %v767
        %v828 = vpack.c.b16 %v772, %v770
        %v829 = vpack.c.b16 %v773, %v771
        %v830 = vpack.c.b16 %v776, %v774
        %v831 = vpack.c.b16 %v777, %v775
        %v832 = vpack.c.b16 %v780, %v778
        %v833 = vpack.c.b16 %v781, %v779
        %v834 = vpack.c.b16 %v784, %v782
        %v835 = vpack.c.b16 %v785, %v783
        %v836 = vpack.c.b16 %v788, %v786
        %v837 = vpack.c.b16 %v789, %v787
        %v838 = vpack.c.b16 %v792, %v790
        %v839 = vpack.c.b16 %v793, %v791
        %v840 = vpack.c.b16 %v796, %v794
        %v841 = vpack.c.b16 %v797, %v795
        %v842 = vpack.c.b16 %v800, %v798
        %v843 = vpack.c.b16 %v801, %v799
        %v844 = vpack.c.b16 %v804, %v802
        %v845 = vpack.c.b16 %v805, %v803
        %v846 = vpack.c.b16 %v808, %v806
        %v847 = vpack.c.b16 %v809, %v807
        %v848 = vpack.c.b16 %v812, %v810
        %v849 = vpack.c.b16 %v813, %v811
        %v850 = vpack.c.b16 %v816, %v814
        %v851 = vpack.c.b16 %v817, %v815
        %v852 = vpack.c.b16 %v820, %v818
        %v853 = vpack.c.b16 %v821, %v819
        %886 = vmatprep.subr.bf16.mxu0 %v823
        %887 = vmatpush1.bf16.msra.mxu0 %v822
        %888 = vmatprep.subr.bf16.mxu0 %v825
        %889 = vmatpush1.bf16.msra.mxu0 %v824
        %890 = vmatprep.subr.bf16.mxu0 %v827
        %891 = vmatpush1.bf16.msra.mxu0 %v826
        %892 = vmatprep.subr.bf16.mxu0 %v829
        %893 = vmatpush1.bf16.msra.mxu0 %v828
        %894 = vmatprep.subr.bf16.mxu0 %v831
        %895 = vmatpush1.bf16.msra.mxu0 %v830
        %896 = vmatprep.subr.bf16.mxu0 %v833
        %897 = vmatpush1.bf16.msra.mxu0 %v832
        %898 = vmatprep.subr.bf16.mxu0 %v835
        %899 = vmatpush1.bf16.msra.mxu0 %v834
        %900 = vmatprep.subr.bf16.mxu0 %v837
        %901 = vmatpush1.bf16.msra.mxu0 %v836
        %902 = vmatprep.subr.bf16.mxu0 %v839
        %903 = vmatpush1.bf16.msra.mxu0 %v838
        %904 = vmatprep.subr.bf16.mxu0 %v841
        %905 = vmatpush1.bf16.msra.mxu0 %v840
        %906 = vmatprep.subr.bf16.mxu0 %v843
        %907 = vmatpush1.bf16.msra.mxu0 %v842
        %908 = vmatprep.subr.bf16.mxu0 %v845
        %909 = vmatpush1.bf16.msra.mxu0 %v844
        %910 = vmatprep.subr.bf16.mxu0 %v847
        %911 = vmatpush1.bf16.msra.mxu0 %v846
        %912 = vmatprep.subr.bf16.mxu0 %v849
        %913 = vmatpush1.bf16.msra.mxu0 %v848
        %914 = vmatprep.subr.bf16.mxu0 %v851
        %915 = vmatpush1.bf16.msra.mxu0 %v850
        %916 = vmatprep.subr.bf16.mxu0 %v853
        %917 = vmatpush1.bf16.msra.mxu0 %v852
        %918 = vmatprep.mubr.bf16.mxu0 %v723
        %919 = vmatmul.mubr.bf16.gmra.mrb[0].mxu0 %v716
        %v920 = vpop.f32.mrb[0].mxu0
        %v921 = vadd.f32 0.0, %v920
        %v922 = vpop.f32.mrb[0].mxu0
        %v923 = vadd.f32 0.0, %v922
        %v924 = vpop.f32.mrb[0].mxu0
        %v925 = vpop.f32.mrb[0].mxu0
        %926 = vdwg.mxu0
        %v927 = vadd.f32 %v661, %v921
        %v928 = vadd.f32 %v663, %v923
        %v929 = vld [vmem:[%s183 + $0x8] sm:$0xff]
        %v930 = vld [vmem:[%s183 + $0x18] sm:$0x11]
        %s931 = scalar_lea.vmem [#allocation2], 768
        %v932 = vld [vmem:[%s931] sm:$0xff]
        %v933 = vld [vmem:[%s931 + $0x8] sm:$0xff]
        %v934 = vld [vmem:[%s931 + $0x10] sm:$0xff]
        %v935 = vld [vmem:[%s931 + $0x18] sm:$0xff]
        %v936 = vld [vmem:[%s931 + $0x20] sm:$0xff]
        %v937 = vld [vmem:[%s931 + $0x28] sm:$0xff]
        %v938 = vld [vmem:[%s931 + $0x30] sm:$0xff]
        %v939 = vld [vmem:[%s931 + $0x38] sm:$0xff]
        %v940 = vld [vmem:[%s931 + $0x40] sm:$0xff]
        %v941 = vld [vmem:[%s931 + $0x48] sm:$0xff]
        %v942 = vld [vmem:[%s931 + $0x50] sm:$0xff]
        %v943 = vld [vmem:[%s931 + $0x58] sm:$0xff]
        %v944 = vld [vmem:[%s931 + $0x60] sm:$0xff]
        %v945 = vld [vmem:[%s931 + $0x68] sm:$0xff]
        %v946 = vld [vmem:[%s931 + $0x70] sm:$0xff]
        %v947 = vld [vmem:[%s931 + $0x78] sm:$0xff]
        %v948 = vld [vmem:[%s931 + $0x80] sm:$0xff]
        %v949 = vld [vmem:[%s931 + $0x88] sm:$0xff]
        %v950 = vld [vmem:[%s931 + $0x90] sm:$0xff]
        %v951 = vld [vmem:[%s931 + $0x98] sm:$0xff]
        %v952 = vld [vmem:[%s931 + $0xa0] sm:$0xff]
        %v953 = vld [vmem:[%s931 + $0xa8] sm:$0xff]
        %v954 = vld [vmem:[%s931 + $0xb0] sm:$0xff]
        %v955 = vld [vmem:[%s931 + $0xb8] sm:$0xff]
        %v956 = vld [vmem:[%s931 + $0xc0] sm:$0xff]
        %v957 = vld [vmem:[%s931 + $0xc8] sm:$0xff]
        %v958 = vld [vmem:[%s931 + $0xd0] sm:$0xff]
        %v959 = vld [vmem:[%s931 + $0xd8] sm:$0xff]
        %v960 = vld [vmem:[%s931 + $0xe0] sm:$0xff]
        %v961 = vld [vmem:[%s931 + $0xe8] sm:$0xff]
        %v962 = vld [vmem:[%s931 + $0xf0] sm:$0xff]
        %v963 = vld [vmem:[%s931 + $0xf8] sm:$0xff]
        %v966 = vunpack.c.l.b16 %v929
        %v967 = vunpack.c.h.b16 %v929
        %v968 = vunpack.c.l.b16 %v930
        %v969 = vunpack.c.h.b16 %v930
        %v970 = vpack.c.b16 %v968, %v966
        %v971 = vpack.c.b16 %v969, %v967
        %v973 = vshrl.u32 %v970, 16
        %v975 = vshll.u32 %v970, 16
        %v977 = vrot.slane %v975, 1
        %v978 = vor.u32 %v973, %v977
        %v980 = vshrl.u32 %v971, 16
        %v982 = vshll.u32 %v971, 16
        %v984 = vrot.slane %v982, 1
        %v985 = vor.u32 %v980, %v984
        %v1020 = vunpack.c.l.b16 %v932
        %v1021 = vunpack.c.h.b16 %v932
        %v1022 = vunpack.c.l.b16 %v933
        %v1023 = vunpack.c.h.b16 %v933
        %v1024 = vunpack.c.l.b16 %v934
        %v1025 = vunpack.c.h.b16 %v934
        %v1026 = vunpack.c.l.b16 %v935
        %v1027 = vunpack.c.h.b16 %v935
        %v1028 = vunpack.c.l.b16 %v936
        %v1029 = vunpack.c.h.b16 %v936
        %v1030 = vunpack.c.l.b16 %v937
        %v1031 = vunpack.c.h.b16 %v937
        %v1032 = vunpack.c.l.b16 %v938
        %v1033 = vunpack.c.h.b16 %v938
        %v1034 = vunpack.c.l.b16 %v939
        %v1035 = vunpack.c.h.b16 %v939
        %v1036 = vunpack.c.l.b16 %v940
        %v1037 = vunpack.c.h.b16 %v940
        %v1038 = vunpack.c.l.b16 %v941
        %v1039 = vunpack.c.h.b16 %v941
        %v1040 = vunpack.c.l.b16 %v942
        %v1041 = vunpack.c.h.b16 %v942
        %v1042 = vunpack.c.l.b16 %v943
        %v1043 = vunpack.c.h.b16 %v943
        %v1044 = vunpack.c.l.b16 %v944
        %v1045 = vunpack.c.h.b16 %v944
        %v1046 = vunpack.c.l.b16 %v945
        %v1047 = vunpack.c.h.b16 %v945
        %v1048 = vunpack.c.l.b16 %v946
        %v1049 = vunpack.c.h.b16 %v946
        %v1050 = vunpack.c.l.b16 %v947
        %v1051 = vunpack.c.h.b16 %v947
        %v1052 = vunpack.c.l.b16 %v948
        %v1053 = vunpack.c.h.b16 %v948
        %v1054 = vunpack.c.l.b16 %v949
        %v1055 = vunpack.c.h.b16 %v949
        %v1056 = vunpack.c.l.b16 %v950
        %v1057 = vunpack.c.h.b16 %v950
        %v1058 = vunpack.c.l.b16 %v951
        %v1059 = vunpack.c.h.b16 %v951
        %v1060 = vunpack.c.l.b16 %v952
        %v1061 = vunpack.c.h.b16 %v952
        %v1062 = vunpack.c.l.b16 %v953
        %v1063 = vunpack.c.h.b16 %v953
        %v1064 = vunpack.c.l.b16 %v954
        %v1065 = vunpack.c.h.b16 %v954
        %v1066 = vunpack.c.l.b16 %v955
        %v1067 = vunpack.c.h.b16 %v955
        %v1068 = vunpack.c.l.b16 %v956
        %v1069 = vunpack.c.h.b16 %v956
        %v1070 = vunpack.c.l.b16 %v957
        %v1071 = vunpack.c.h.b16 %v957
        %v1072 = vunpack.c.l.b16 %v958
        %v1073 = vunpack.c.h.b16 %v958
        %v1074 = vunpack.c.l.b16 %v959
        %v1075 = vunpack.c.h.b16 %v959
        %v1076 = vunpack.c.l.b16 %v960
        %v1077 = vunpack.c.h.b16 %v960
        %v1078 = vunpack.c.l.b16 %v961
        %v1079 = vunpack.c.h.b16 %v961
        %v1080 = vunpack.c.l.b16 %v962
        %v1081 = vunpack.c.h.b16 %v962
        %v1082 = vunpack.c.l.b16 %v963
        %v1083 = vunpack.c.h.b16 %v963
        %v1084 = vpack.c.b16 %v1022, %v1020
        %v1085 = vpack.c.b16 %v1023, %v1021
        %v1086 = vpack.c.b16 %v1026, %v1024
        %v1087 = vpack.c.b16 %v1027, %v1025
        %v1088 = vpack.c.b16 %v1030, %v1028
        %v1089 = vpack.c.b16 %v1031, %v1029
        %v1090 = vpack.c.b16 %v1034, %v1032
        %v1091 = vpack.c.b16 %v1035, %v1033
        %v1092 = vpack.c.b16 %v1038, %v1036
        %v1093 = vpack.c.b16 %v1039, %v1037
        %v1094 = vpack.c.b16 %v1042, %v1040
        %v1095 = vpack.c.b16 %v1043, %v1041
        %v1096 = vpack.c.b16 %v1046, %v1044
        %v1097 = vpack.c.b16 %v1047, %v1045
        %v1098 = vpack.c.b16 %v1050, %v1048
        %v1099 = vpack.c.b16 %v1051, %v1049
        %v1100 = vpack.c.b16 %v1054, %v1052
        %v1101 = vpack.c.b16 %v1055, %v1053
        %v1102 = vpack.c.b16 %v1058, %v1056
        %v1103 = vpack.c.b16 %v1059, %v1057
        %v1104 = vpack.c.b16 %v1062, %v1060
        %v1105 = vpack.c.b16 %v1063, %v1061
        %v1106 = vpack.c.b16 %v1066, %v1064
        %v1107 = vpack.c.b16 %v1067, %v1065
        %v1108 = vpack.c.b16 %v1070, %v1068
        %v1109 = vpack.c.b16 %v1071, %v1069
        %v1110 = vpack.c.b16 %v1074, %v1072
        %v1111 = vpack.c.b16 %v1075, %v1073
        %v1112 = vpack.c.b16 %v1078, %v1076
        %v1113 = vpack.c.b16 %v1079, %v1077
        %v1114 = vpack.c.b16 %v1082, %v1080
        %v1115 = vpack.c.b16 %v1083, %v1081
        %1148 = vmatprep.subr.bf16.mxu0 %v1085
        %1149 = vmatpush1.bf16.msra.mxu0 %v1084
        %1150 = vmatprep.subr.bf16.mxu0 %v1087
        %1151 = vmatpush1.bf16.msra.mxu0 %v1086
        %1152 = vmatprep.subr.bf16.mxu0 %v1089
        %1153 = vmatpush1.bf16.msra.mxu0 %v1088
        %1154 = vmatprep.subr.bf16.mxu0 %v1091
        %1155 = vmatpush1.bf16.msra.mxu0 %v1090
        %1156 = vmatprep.subr.bf16.mxu0 %v1093
        %1157 = vmatpush1.bf16.msra.mxu0 %v1092
        %1158 = vmatprep.subr.bf16.mxu0 %v1095
        %1159 = vmatpush1.bf16.msra.mxu0 %v1094
        %1160 = vmatprep.subr.bf16.mxu0 %v1097
        %1161 = vmatpush1.bf16.msra.mxu0 %v1096
        %1162 = vmatprep.subr.bf16.mxu0 %v1099
        %1163 = vmatpush1.bf16.msra.mxu0 %v1098
        %1164 = vmatprep.subr.bf16.mxu0 %v1101
        %1165 = vmatpush1.bf16.msra.mxu0 %v1100
        %1166 = vmatprep.subr.bf16.mxu0 %v1103
        %1167 = vmatpush1.bf16.msra.mxu0 %v1102
        %1168 = vmatprep.subr.bf16.mxu0 %v1105
        %1169 = vmatpush1.bf16.msra.mxu0 %v1104
        %1170 = vmatprep.subr.bf16.mxu0 %v1107
        %1171 = vmatpush1.bf16.msra.mxu0 %v1106
        %1172 = vmatprep.subr.bf16.mxu0 %v1109
        %1173 = vmatpush1.bf16.msra.mxu0 %v1108
        %1174 = vmatprep.subr.bf16.mxu0 %v1111
        %1175 = vmatpush1.bf16.msra.mxu0 %v1110
        %1176 = vmatprep.subr.bf16.mxu0 %v1113
        %1177 = vmatpush1.bf16.msra.mxu0 %v1112
        %1178 = vmatprep.subr.bf16.mxu0 %v1115
        %1179 = vmatpush1.bf16.msra.mxu0 %v1114
        %1180 = vmatprep.mubr.bf16.mxu0 %v985
        %1181 = vmatmul.mubr.bf16.gmra.mrb[0].mxu0 %v978
        %v1182 = vpop.f32.mrb[0].mxu0
        %v1183 = vadd.f32 0.0, %v1182
        %v1184 = vpop.f32.mrb[0].mxu0
        %v1185 = vadd.f32 0.0, %v1184
        %v1186 = vpop.f32.mrb[0].mxu0
        %v1187 = vpop.f32.mrb[0].mxu0
        %1188 = vdwg.mxu0
        %v1189 = vadd.f32 %v927, %v1183
        %v1190 = vadd.f32 %v928, %v1185
        %v1191 = vld [vmem:[%s183] sm:$0xee]
        %s1192 = scalar_lea.vmem [#allocation2], 1024
        %v1193 = vld [vmem:[%s1192] sm:$0xff]
        %v1194 = vld [vmem:[%s1192 + $0x8] sm:$0xff]
        %v1195 = vld [vmem:[%s1192 + $0x10] sm:$0xff]
        %v1196 = vld [vmem:[%s1192 + $0x18] sm:$0xff]
        %v1197 = vld [vmem:[%s1192 + $0x20] sm:$0xff]
        %v1198 = vld [vmem:[%s1192 + $0x28] sm:$0xff]
        %v1199 = vld [vmem:[%s1192 + $0x30] sm:$0xff]
        %v1200 = vld [vmem:[%s1192 + $0x38] sm:$0xff]
        %v1201 = vld [vmem:[%s1192 + $0x40] sm:$0xff]
        %v1202 = vld [vmem:[%s1192 + $0x48] sm:$0xff]
        %v1203 = vld [vmem:[%s1192 + $0x50] sm:$0xff]
        %v1204 = vld [vmem:[%s1192 + $0x58] sm:$0xff]
        %v1205 = vld [vmem:[%s1192 + $0x60] sm:$0xff]
        %v1206 = vld [vmem:[%s1192 + $0x68] sm:$0xff]
        %v1207 = vld [vmem:[%s1192 + $0x70] sm:$0xff]
        %v1208 = vld [vmem:[%s1192 + $0x78] sm:$0xff]
        %v1209 = vld [vmem:[%s1192 + $0x80] sm:$0xff]
        %v1210 = vld [vmem:[%s1192 + $0x88] sm:$0xff]
        %v1211 = vld [vmem:[%s1192 + $0x90] sm:$0xff]
        %v1212 = vld [vmem:[%s1192 + $0x98] sm:$0xff]
        %v1213 = vld [vmem:[%s1192 + $0xa0] sm:$0xff]
        %v1214 = vld [vmem:[%s1192 + $0xa8] sm:$0xff]
        %v1215 = vld [vmem:[%s1192 + $0xb0] sm:$0xff]
        %v1216 = vld [vmem:[%s1192 + $0xb8] sm:$0xff]
        %v1217 = vld [vmem:[%s1192 + $0xc0] sm:$0xff]
        %v1218 = vld [vmem:[%s1192 + $0xc8] sm:$0xff]
        %v1219 = vld [vmem:[%s1192 + $0xd0] sm:$0xff]
        %v1220 = vld [vmem:[%s1192 + $0xd8] sm:$0xff]
        %v1221 = vld [vmem:[%s1192 + $0xe0] sm:$0xff]
        %v1222 = vld [vmem:[%s1192 + $0xe8] sm:$0xff]
        %v1223 = vld [vmem:[%s1192 + $0xf0] sm:$0xff]
        %v1224 = vld [vmem:[%s1192 + $0xf8] sm:$0xff]
        %v1226 = vunpack.c.l.b16 %v1191
        %v1227 = vunpack.c.h.b16 %v1191
        %v1228 = vpack.c.b16 %v706, %v1226
        %v1229 = vpack.c.b16 %v707, %v1227
        %v1230 = vrot.slane %v1228, 1
        %v1231 = vrot.slane %v1229, 1
        %v1266 = vunpack.c.l.b16 %v1193
        %v1267 = vunpack.c.h.b16 %v1193
        %v1268 = vunpack.c.l.b16 %v1194
        %v1269 = vunpack.c.h.b16 %v1194
        %v1270 = vunpack.c.l.b16 %v1195
        %v1271 = vunpack.c.h.b16 %v1195
        %v1272 = vunpack.c.l.b16 %v1196
        %v1273 = vunpack.c.h.b16 %v1196
        %v1274 = vunpack.c.l.b16 %v1197
        %v1275 = vunpack.c.h.b16 %v1197
        %v1276 = vunpack.c.l.b16 %v1198
        %v1277 = vunpack.c.h.b16 %v1198
        %v1278 = vunpack.c.l.b16 %v1199
        %v1279 = vunpack.c.h.b16 %v1199
        %v1280 = vunpack.c.l.b16 %v1200
        %v1281 = vunpack.c.h.b16 %v1200
        %v1282 = vunpack.c.l.b16 %v1201
        %v1283 = vunpack.c.h.b16 %v1201
        %v1284 = vunpack.c.l.b16 %v1202
        %v1285 = vunpack.c.h.b16 %v1202
        %v1286 = vunpack.c.l.b16 %v1203
        %v1287 = vunpack.c.h.b16 %v1203
        %v1288 = vunpack.c.l.b16 %v1204
        %v1289 = vunpack.c.h.b16 %v1204
        %v1290 = vunpack.c.l.b16 %v1205
        %v1291 = vunpack.c.h.b16 %v1205
        %v1292 = vunpack.c.l.b16 %v1206
        %v1293 = vunpack.c.h.b16 %v1206
        %v1294 = vunpack.c.l.b16 %v1207
        %v1295 = vunpack.c.h.b16 %v1207
        %v1296 = vunpack.c.l.b16 %v1208
        %v1297 = vunpack.c.h.b16 %v1208
        %v1298 = vunpack.c.l.b16 %v1209
        %v1299 = vunpack.c.h.b16 %v1209
        %v1300 = vunpack.c.l.b16 %v1210
        %v1301 = vunpack.c.h.b16 %v1210
        %v1302 = vunpack.c.l.b16 %v1211
        %v1303 = vunpack.c.h.b16 %v1211
        %v1304 = vunpack.c.l.b16 %v1212
        %v1305 = vunpack.c.h.b16 %v1212
        %v1306 = vunpack.c.l.b16 %v1213
        %v1307 = vunpack.c.h.b16 %v1213
        %v1308 = vunpack.c.l.b16 %v1214
        %v1309 = vunpack.c.h.b16 %v1214
        %v1310 = vunpack.c.l.b16 %v1215
        %v1311 = vunpack.c.h.b16 %v1215
        %v1312 = vunpack.c.l.b16 %v1216
        %v1313 = vunpack.c.h.b16 %v1216
        %v1314 = vunpack.c.l.b16 %v1217
        %v1315 = vunpack.c.h.b16 %v1217
        %v1316 = vunpack.c.l.b16 %v1218
        %v1317 = vunpack.c.h.b16 %v1218
        %v1318 = vunpack.c.l.b16 %v1219
        %v1319 = vunpack.c.h.b16 %v1219
        %v1320 = vunpack.c.l.b16 %v1220
        %v1321 = vunpack.c.h.b16 %v1220
        %v1322 = vunpack.c.l.b16 %v1221
        %v1323 = vunpack.c.h.b16 %v1221
        %v1324 = vunpack.c.l.b16 %v1222
        %v1325 = vunpack.c.h.b16 %v1222
        %v1326 = vunpack.c.l.b16 %v1223
        %v1327 = vunpack.c.h.b16 %v1223
        %v1328 = vunpack.c.l.b16 %v1224
        %v1329 = vunpack.c.h.b16 %v1224
        %v1330 = vpack.c.b16 %v1268, %v1266
        %v1331 = vpack.c.b16 %v1269, %v1267
        %v1332 = vpack.c.b16 %v1272, %v1270
        %v1333 = vpack.c.b16 %v1273, %v1271
        %v1334 = vpack.c.b16 %v1276, %v1274
        %v1335 = vpack.c.b16 %v1277, %v1275
        %v1336 = vpack.c.b16 %v1280, %v1278
        %v1337 = vpack.c.b16 %v1281, %v1279
        %v1338 = vpack.c.b16 %v1284, %v1282
        %v1339 = vpack.c.b16 %v1285, %v1283
        %v1340 = vpack.c.b16 %v1288, %v1286
        %v1341 = vpack.c.b16 %v1289, %v1287
        %v1342 = vpack.c.b16 %v1292, %v1290
        %v1343 = vpack.c.b16 %v1293, %v1291
        %v1344 = vpack.c.b16 %v1296, %v1294
        %v1345 = vpack.c.b16 %v1297, %v1295
        %v1346 = vpack.c.b16 %v1300, %v1298
        %v1347 = vpack.c.b16 %v1301, %v1299
        %v1348 = vpack.c.b16 %v1304, %v1302
        %v1349 = vpack.c.b16 %v1305, %v1303
        %v1350 = vpack.c.b16 %v1308, %v1306
        %v1351 = vpack.c.b16 %v1309, %v1307
        %v1352 = vpack.c.b16 %v1312, %v1310
        %v1353 = vpack.c.b16 %v1313, %v1311
        %v1354 = vpack.c.b16 %v1316, %v1314
        %v1355 = vpack.c.b16 %v1317, %v1315
        %v1356 = vpack.c.b16 %v1320, %v1318
        %v1357 = vpack.c.b16 %v1321, %v1319
        %v1358 = vpack.c.b16 %v1324, %v1322
        %v1359 = vpack.c.b16 %v1325, %v1323
        %v1360 = vpack.c.b16 %v1328, %v1326
        %v1361 = vpack.c.b16 %v1329, %v1327
        %1394 = vmatprep.subr.bf16.mxu0 %v1331
        %1395 = vmatpush1.bf16.msra.mxu0 %v1330
        %1396 = vmatprep.subr.bf16.mxu0 %v1333
        %1397 = vmatpush1.bf16.msra.mxu0 %v1332
        %1398 = vmatprep.subr.bf16.mxu0 %v1335
        %1399 = vmatpush1.bf16.msra.mxu0 %v1334
        %1400 = vmatprep.subr.bf16.mxu0 %v1337
        %1401 = vmatpush1.bf16.msra.mxu0 %v1336
        %1402 = vmatprep.subr.bf16.mxu0 %v1339
        %1403 = vmatpush1.bf16.msra.mxu0 %v1338
        %1404 = vmatprep.subr.bf16.mxu0 %v1341
        %1405 = vmatpush1.bf16.msra.mxu0 %v1340
        %1406 = vmatprep.subr.bf16.mxu0 %v1343
        %1407 = vmatpush1.bf16.msra.mxu0 %v1342
        %1408 = vmatprep.subr.bf16.mxu0 %v1345
        %1409 = vmatpush1.bf16.msra.mxu0 %v1344
        %1410 = vmatprep.subr.bf16.mxu0 %v1347
        %1411 = vmatpush1.bf16.msra.mxu0 %v1346
        %1412 = vmatprep.subr.bf16.mxu0 %v1349
        %1413 = vmatpush1.bf16.msra.mxu0 %v1348
        %1414 = vmatprep.subr.bf16.mxu0 %v1351
        %1415 = vmatpush1.bf16.msra.mxu0 %v1350
        %1416 = vmatprep.subr.bf16.mxu0 %v1353
        %1417 = vmatpush1.bf16.msra.mxu0 %v1352
        %1418 = vmatprep.subr.bf16.mxu0 %v1355
        %1419 = vmatpush1.bf16.msra.mxu0 %v1354
        %1420 = vmatprep.subr.bf16.mxu0 %v1357
        %1421 = vmatpush1.bf16.msra.mxu0 %v1356
        %1422 = vmatprep.subr.bf16.mxu0 %v1359
        %1423 = vmatpush1.bf16.msra.mxu0 %v1358
        %1424 = vmatprep.subr.bf16.mxu0 %v1361
        %1425 = vmatpush1.bf16.msra.mxu0 %v1360
        %1426 = vmatprep.mubr.bf16.mxu0 %v1231
        %1427 = vmatmul.mubr.bf16.gmra.mrb[0].mxu0 %v1230
        %v1428 = vpop.f32.mrb[0].mxu0
        %v1429 = vadd.f32 0.0, %v1428
        %v1430 = vpop.f32.mrb[0].mxu0
        %v1431 = vadd.f32 0.0, %v1430
        %v1432 = vpop.f32.mrb[0].mxu0
        %v1433 = vpop.f32.mrb[0].mxu0
        %1434 = vdwg.mxu0
        %v1435 = vadd.f32 %v1189, %v1429
        %v1436 = vadd.f32 %v1190, %v1431
        %v1437 = vld [vmem:[%s2] sm:$0x3]
        %v1439 = vlaneseq
        %v1440 = vshrl.u32 %v1439, 7
        %v1441 = vsub.s32 0, %v1440
        %v1442 = vrot.slane %v1437, %v1441
        %v1443 = vlaneseq
        %v1444 = vshrl.u32 %v1443, 7
        %v1445 = vsub.s32 1, %v1444
        %v1446 = vrot.slane %v1437, %v1445
        %v1449 = vadd.f32 %v1435, %v1442
        %v1450 = vadd.f32 %v1436, %v1446
        %v1451 = vmax.f32 %v1449, 0.0
        %v1452 = vmax.f32 %v1450, 0.0
        %v1453 = vpack.c.bf16 %v1451, %v1451
        %v1454 = vpack.c.bf16 %v1452, %v1452
        %v1457 = vunpack.c.l.b16 %v1453
        %v1458 = vunpack.c.l.b16 %v1454
        %v1459 = vpack.c.b16 %v1458, %v1457
        %1461 = vst [vmem:[%s178] sm:$0xff] %v1459
        %s1462 = sand.u32 %s94, 1
        %s1463 = scalar_lea.sflag [#allocation4], %s1462
        %s1464 = sand.u32 %s94, 1
        %s1465 = smul.addr %s1464, 8
        %s1466 = scalar_lea.vmem [#allocation5], %s1465
        // Predicated region
        $region37: #{tpu_custom_call.1} parent=31 // pred_check
          %p1467 = pneg %p104
        $region38: #{tpu_custom_call.1} parent=31 // pred_check_branch
          %1469 = sbr.rel (%p1467) target = $region40
        $region39: #{tpu_custom_call.1} parent=31 // pred_region
          %s1471 = ssub.s32 128, 128
          %1472 = vsyncadd %s1463, %s1471
          %s1473 = smul.addr %s18, 2
          %s1474 = smul.addr %s1473, 64
          %s1475 = scalar_lea.hbm %s3, %s1474
          %s1477 = sshll.u32 %s1466, 4
          %s1478 = int_to_ptr.vmem [resolvable:$true] %s1477
          %1480 = dma.vmem_to_hbm [thread:$0]  %s1478, 128, %s1475, %s1463
        $region40: #{tpu_custom_call.1} parent=31 // pred_fallthru
          _
      $region32: #{tpu_custom_call.1} parent=5 // pred_fallthru
        _
      %p1481 = scmp.le.s32.totalorder 2, %s13
      // Predicated region
      $region41: #{tpu_custom_call.1} parent=5 // pred_check
        %p1482 = pneg %p1481
      $region42: #{tpu_custom_call.1} parent=5 // pred_check_branch
        %1484 = sbr.rel (%p1482) target = $region44
      $region43: #{tpu_custom_call.1} parent=5 // pred_region
        %s1485 = ssub.s32 %s13, 2
        // Predicated region
        $region45: #{tpu_custom_call.1} parent=43 // pred_check
          %p1486 = pneg %p110
        $region46: #{tpu_custom_call.1} parent=43 // pred_check_branch
          %1488 = sbr.rel (%p1486) target = $region48
        $region47: #{tpu_custom_call.1} parent=43 // pred_region
          %s1489 = sand.u32 %s95, 1
          %s1490 = scalar_lea.sflag [#allocation4], %s1489
          %s1491 = sand.u32 %s95, 1
          %s1492 = smul.addr %s1491, 8
          %s1493 = scalar_lea.vmem [#allocation5], %s1492
          %1494 = dma.done %s1490, 128
        $region48: #{tpu_custom_call.1} parent=43 // pred_fallthru
          _
      $region44: #{tpu_custom_call.1} parent=5 // pred_fallthru
        _
    $region6: #{tpu_custom_call.1} parent=1 // loop_footer
      %s17 = sadd.s32 1, %s13
    $region7: #{tpu_custom_call.1} parent=1 // loop_footer_branch
      %12 = sbr.rel target = $region3
    $region8: #{tpu_custom_call.1} parent=1 // loop_exit
      _
    %1495 = vsyncpa [#allocation3], 1
    %s1496 = scalar_lea.sflag [#allocation3], 1
    %1497 = vsyncpa %s1496, 1
    %1498 = vsyncpa [#allocation4], 1
    %s1499 = scalar_lea.sflag [#allocation4], 1
    %1500 = vsyncpa %s1499, 1

</llo_original>
